<compile_context>
chip_gen: v6e
topology: v6e:2x2x1
jax: 0.10.0
libtpu: 0.0.40
codegen_flags: <defaults>
</compile_context>

<pallas_src>
import jax
import jax.numpy as jnp
from jax.experimental import pallas as pl
from jax.experimental.pallas import tpu as pltpu

# ---- problem sizes (toy shapes implied by the module) -----------------------
B, C, H, W = 2, 4, 16, 16
D = C * H * W                        # 1024 flattened features
K = 16                               # number of classes

# ---- TPU-native padded sizes ------------------------------------------------
B_PAD = 16                           # bf16 sublane pack: one (16,128) vreg of x
K_PAD = max(128, -(-K // 128) * 128) # lane-aligned class dim  -> 128
NEG_BIG = -1e30                      # finite "-inf" mask for padded classes
                                     # (must stay finite: 0 * -inf == NaN)

_COMPILER_PARAMS = pltpu.CompilerParams(vmem_limit_bytes=8 * 1024 * 1024)
_VMEM_SPEC = pl.BlockSpec(memory_space=pltpu.MemorySpace.VMEM)
_SMEM_SPEC = pl.BlockSpec(memory_space=pltpu.MemorySpace.SMEM)


# =============================================================================
# Kernels (gridless: whole problem fits VMEM on every generation)
# =============================================================================
def _logits(x_ref, w_ref, b_ref):
    """bf16 x bf16 MXU matmul, f32 accumulate, padded-class bias applied."""
    return jnp.dot(x_ref[...], w_ref[...],
                   preferred_element_type=jnp.float32) + b_ref[...]


def train_kernel(x_ref, w_ref, b_ref, lab_ref, loss_ref):
    """forward_train: masked softmax cross-entropy, mean over the REAL batch."""
    logits = _logits(x_ref, w_ref, b_ref)                       # (B_PAD, K_PAD) f32

    m = jnp.max(logits, axis=-1, keepdims=True)                 # (B_PAD, 1)
    lse = m + jnp.log(jnp.sum(jnp.exp(logits - m), axis=-1, keepdims=True))

    row = jax.lax.broadcasted_iota(jnp.int32, logits.shape, 0)  # sublane index
    cls = jax.lax.broadcasted_iota(jnp.int32, logits.shape, 1)  # lane index

    # Labels live in SMEM; read them as scalars in the epilogue (B is tiny and
    # static) and broadcast into a per-row label matrix. -1 never matches.
    lab_full = jnp.full(logits.shape, -1, jnp.int32)
    for i in range(B):
        lab_full = jnp.where(row == i, lab_ref[i], lab_full)

    onehot = (cls == lab_full).astype(jnp.float32)              # 0 at padded cls/rows
    true_logit = jnp.sum(onehot * logits, axis=-1, keepdims=True)
    per_sample = lse - true_logit                               # (B_PAD, 1)

    # Mask padded batch rows; divide by the REAL batch size.
    rowv = jax.lax.broadcasted_iota(jnp.int32, per_sample.shape, 0)
    valid = (rowv < B).astype(jnp.float32)
    loss_ref[0, 0] = jnp.sum(per_sample * valid) * (1.0 / B)


def test_kernel(x_ref, w_ref, b_ref, probs_ref):
    """forward_test: softmax probabilities (lane-dense (16,128) f32 store)."""
    logits = _logits(x_ref, w_ref, b_ref)
    m = jnp.max(logits, axis=-1, keepdims=True)
    e = jnp.exp(logits - m)                                     # padded cols -> 0
    denom = jnp.sum(e, axis=-1, keepdims=True)
    probs_ref[...] = e * pl.reciprocal(denom, approx=True)


# =============================================================================
# Wrapper mirroring BaseClassifier.forward dispatch semantics
# =============================================================================
class BaseClassifierPallas:
    """Flatten -> linear head classifier with BaseClassifier.forward dispatch."""

    def __init__(self, key):
        kw, _ = jax.random.split(key)
        # Deterministic synthetic parameters (linear head D -> K), f32 masters.
        self.w = jax.random.normal(kw, (D, K), jnp.float32) * 0.02
        self.b = jnp.zeros((1, K), jnp.float32)
        # Padded, MXU-ready copies: bf16 weights, -1e30 bias on padded classes.
        # NOTE: at 256 KiB the weight could be kept resident / prefetched across
        # calls (cross-call future) if this head were called in a tight loop.
        self.w_pad = (jnp.zeros((D, K_PAD), jnp.bfloat16)
                      .at[:, :K].set(self.w.astype(jnp.bfloat16)))
        self.b_pad = (jnp.full((1, K_PAD), NEG_BIG, jnp.float32)
                      .at[:, :K].set(self.b))

    # --- input padding helpers ----------------------------------------------
    @staticmethod
    def _pad_x(imgs):
        x = imgs.reshape(imgs.shape[0], -1).astype(jnp.bfloat16)     # (B, D)
        return jnp.zeros((B_PAD, D), jnp.bfloat16).at[:x.shape[0]].set(x)

    @staticmethod
    def _pad_labels(labels):
        lab = labels.reshape(-1).astype(jnp.int32)
        return jnp.zeros((B_PAD,), jnp.int32).at[:lab.shape[0]].set(lab)

    # --- forward_train: softmax cross-entropy loss ---------------------------
    def forward_train(self, imgs, labels, **kwargs):
        x_pad = self._pad_x(imgs)
        lab_pad = self._pad_labels(labels)
        loss = pl.pallas_call(
            train_kernel,
            out_shape=jax.ShapeDtypeStruct((1, 1), jnp.float32),
            in_specs=[_VMEM_SPEC, _VMEM_SPEC, _VMEM_SPEC, _SMEM_SPEC],
            out_specs=_SMEM_SPEC,
            compiler_params=_COMPILER_PARAMS,
        )(x_pad, self.w_pad, self.b_pad, lab_pad)
        return loss[0, 0]

    # --- forward_test: class probabilities -----------------------------------
    def forward_test(self, imgs, labels=None, **kwargs):
        x_pad = self._pad_x(imgs)
        probs_pad = pl.pallas_call(
            test_kernel,
            out_shape=jax.ShapeDtypeStruct((B_PAD, K_PAD), jnp.float32),
            in_specs=[_VMEM_SPEC, _VMEM_SPEC, _VMEM_SPEC],
            out_specs=_VMEM_SPEC,
            compiler_params=_COMPILER_PARAMS,
        )(x_pad, self.w_pad, self.b_pad)
        return probs_pad[:imgs.shape[0], :K]

    # --- dispatcher (matches BaseClassifier.forward) --------------------------
    def forward(self, img, label, return_loss=True, **kwargs):
        if return_loss:
            return self.forward_train(img, label, **kwargs)
        else:
            return self.forward_test(img, label, **kwargs)

    def init_weights(self, pretrained=None):
        # TODO(synk): checkpoint loading has no Pallas equivalent; params are
        # initialized deterministically in __init__ instead.
        pass


# =============================================================================
# Pure-JAX reference (f32 math, unpadded shapes)
# =============================================================================
def _ref_forward(x, w, b, labels, return_loss):
    logits = x.reshape(x.shape[0], -1) @ w + b
    if return_loss:
        logp = jax.nn.log_softmax(logits, axis=-1)
        return -jnp.mean(logp[jnp.arange(x.shape[0]), labels])
    return jax.nn.softmax(logits, axis=-1)


if __name__ == "__main__":
    key = jax.random.PRNGKey(0)
    k_img, k_lab, k_param = jax.random.split(key, 3)

    img = jax.random.normal(k_img, (B, C, H, W), jnp.float32)   # NCHW
    label = jax.random.randint(k_lab, (B,), 0, K, jnp.int32)

    model = BaseClassifierPallas(k_param)

    # return_loss=True path (forward_train)
    loss = jax.block_until_ready(model.forward(img, label, return_loss=True))

    # return_loss=False path (forward_test)
    probs = jax.block_until_ready(model.forward(img, label, return_loss=False))

    # Verify against pure-JAX f32 reference (kernel uses bf16 MXU inputs and an
    # approx reciprocal -> loosened tolerance, intentional).
    ref_loss = _ref_forward(img, model.w, model.b, label, True)
    ref_probs = _ref_forward(img, model.w, model.b, label, False)
    assert probs.shape == (B, K), probs.shape
    assert jnp.allclose(loss, ref_loss, rtol=5e-2, atol=5e-3), (loss, ref_loss)
    assert jnp.allclose(probs, ref_probs, rtol=5e-2, atol=5e-3)

    print("KERNEL_OK")
</pallas_src>

<mosaic_0001>
module attributes {stable_mosaic.version = 11 : i64} {
  func.func @train_kernel(%arg0: memref<16x1024xbf16, #tpu.memory_space<vmem>>, %arg1: memref<1024x128xbf16, #tpu.memory_space<vmem>>, %arg2: memref<1x128xf32, #tpu.memory_space<vmem>>, %arg3: memref<16xi32, #tpu.memory_space<smem>>, %arg4: memref<1x1xf32, #tpu.memory_space<smem>>) attributes {dimension_semantics = [], scalar_prefetch = 0 : i64, scratch_operands = 0 : i64, tpu.core_type = #tpu.core_type<tc>} {
    %c0 = arith.constant 0 : index
    %c0_0 = arith.constant 0 : index
    %0 = vector.load %arg0[%c0, %c0_0] : memref<16x1024xbf16, #tpu.memory_space<vmem>>, vector<16x1024xbf16>
    %c0_1 = arith.constant 0 : index
    %c0_2 = arith.constant 0 : index
    %1 = vector.load %arg1[%c0_1, %c0_2] : memref<1024x128xbf16, #tpu.memory_space<vmem>>, vector<1024x128xbf16>
    %cst = arith.constant dense<0.000000e+00> : vector<16x128xf32>
    %2 = tpu.matmul %0, %1, %cst {dimension_numbers = #tpu.dot_dimension_numbers<[1], [0], [0], [1], [0, 0, 1, 1], [], []>} : vector<16x1024xbf16>, vector<1024x128xbf16>, vector<16x128xf32> -> vector<16x128xf32>
    %c0_3 = arith.constant 0 : index
    %c0_4 = arith.constant 0 : index
    %3 = vector.load %arg2[%c0_3, %c0_4] : memref<1x128xf32, #tpu.memory_space<vmem>>, vector<1x128xf32>
    %4 = vector.broadcast %3 : vector<1x128xf32> to vector<16x128xf32>
    %5 = arith.addf %2, %4 : vector<16x128xf32>
    %cst_5 = arith.constant dense<0xFF800000> : vector<16xf32>
    %6 = vector.multi_reduction <maximumf>, %5, %cst_5 [1] : vector<16x128xf32> to vector<16xf32>
    %7 = vector.shape_cast %6 : vector<16xf32> to vector<16x1xf32>
    %8 = vector.broadcast %7 : vector<16x1xf32> to vector<16x128xf32>
    %9 = arith.subf %5, %8 : vector<16x128xf32>
    %10 = math.exp %9 : vector<16x128xf32>
    %cst_6 = arith.constant dense<0.000000e+00> : vector<16xf32>
    %11 = vector.multi_reduction <add>, %10, %cst_6 [1] : vector<16x128xf32> to vector<16xf32>
    %12 = vector.shape_cast %11 : vector<16xf32> to vector<16x1xf32>
    %13 = math.log %12 : vector<16x1xf32>
    %14 = arith.addf %7, %13 : vector<16x1xf32>
    %15 = tpu.iota {dimensions = array<i32: 0>} : vector<16x128xi32>
    %16 = tpu.iota {dimensions = array<i32: 1>} : vector<16x128xi32>
    %c-1_i32 = arith.constant -1 : i32
    %17 = vector.broadcast %c-1_i32 : i32 to vector<16x128xi32>
    %c0_i32 = arith.constant 0 : i32
    %18 = vector.broadcast %c0_i32 : i32 to vector<16x128xi32>
    %19 = arith.cmpi eq, %15, %18 : vector<16x128xi32>
    %c0_7 = arith.constant 0 : index
    %20 = memref.load %arg3[%c0_7] : memref<16xi32, #tpu.memory_space<smem>>
    %21 = vector.broadcast %20 : i32 to vector<16x128xi32>
    %22 = arith.select %19, %21, %17 : vector<16x128xi1>, vector<16x128xi32>
    %c1_i32 = arith.constant 1 : i32
    %23 = vector.broadcast %c1_i32 : i32 to vector<16x128xi32>
    %24 = arith.cmpi eq, %15, %23 : vector<16x128xi32>
    %c1 = arith.constant 1 : index
    %25 = memref.load %arg3[%c1] : memref<16xi32, #tpu.memory_space<smem>>
    %26 = vector.broadcast %25 : i32 to vector<16x128xi32>
    %27 = arith.select %24, %26, %22 : vector<16x128xi1>, vector<16x128xi32>
    %28 = arith.cmpi eq, %16, %27 : vector<16x128xi32>
    %29 = arith.extui %28 : vector<16x128xi1> to vector<16x128xi32>
    %30 = arith.sitofp %29 : vector<16x128xi32> to vector<16x128xf32>
    %31 = arith.mulf %30, %5 : vector<16x128xf32>
    %cst_8 = arith.constant dense<0.000000e+00> : vector<16xf32>
    %32 = vector.multi_reduction <add>, %31, %cst_8 [1] : vector<16x128xf32> to vector<16xf32>
    %33 = vector.shape_cast %32 : vector<16xf32> to vector<16x1xf32>
    %34 = arith.subf %14, %33 : vector<16x1xf32>
    %35 = tpu.iota {dimensions = array<i32: 0>} : vector<16x1xi32>
    %c2_i32 = arith.constant 2 : i32
    %36 = vector.broadcast %c2_i32 : i32 to vector<16x1xi32>
    %37 = arith.cmpi slt, %35, %36 : vector<16x1xi32>
    %38 = arith.extui %37 : vector<16x1xi1> to vector<16x1xi32>
    %39 = arith.sitofp %38 : vector<16x1xi32> to vector<16x1xf32>
    %40 = arith.mulf %34, %39 : vector<16x1xf32>
    %41 = vector.shape_cast %40 : vector<16x1xf32> to vector<1x16x1xf32>
    %cst_9 = arith.constant dense<0.000000e+00> : vector<1xf32>
    %42 = vector.multi_reduction <add>, %41, %cst_9 [1, 2] : vector<1x16x1xf32> to vector<1xf32>
    %43 = vector.shape_cast %42 : vector<1xf32> to vector<1x1x1xf32>
    %44 = vector.extract %43[0, 0, 0] : f32 from vector<1x1x1xf32>
    %cst_10 = arith.constant 5.000000e-01 : f32
    %45 = arith.mulf %44, %cst_10 : f32
    %c0_11 = arith.constant 0 : index
    %c0_12 = arith.constant 0 : index
    %46 = memref.load %arg4[%c0_11, %c0_12] : memref<1x1xf32, #tpu.memory_space<smem>>
    memref.store %45, %arg4[%c0_11, %c0_12] : memref<1x1xf32, #tpu.memory_space<smem>>
    return
  }
}

</mosaic_0001>

<llo_original>
// kernel: tpu_custom_call.1
$region0: #{tpu_custom_call.1}
  #allocation0 [shape = 'u32[]', space=smem, size = 0x4, offset = 0x4, fixed_abs, tag = 'smem constant byte address 0x4 - core index']
  #allocation1 [shape = 'u32[144,128]{1,0:T(1,128)}', space=vmem, size = 0x12000, scoped, tag = 'internal scratch']
  %s0 = inlined_call_operand.hbm [shape: bf16[16,1024], index: 0, kind: input, shape index: {}]
  %s1 = inlined_call_operand.hbm [shape: bf16[1024,128], index: 1, kind: input, shape index: {}]
  %s2 = inlined_call_operand.vmem [shape: f32[1,128], index: 2, kind: input, shape index: {}]
  %s3 = inlined_call_operand.vmem [shape: s32[16], index: 3, kind: input, shape index: {}]
  %s4 = inlined_call_operand.hbm [shape: f32[1,1], index: 4, kind: output, shape index: {}]
  %s5 = sld [smem:[#allocation0]]
  $region38: #{tpu_custom_call.1} parent=0
    _
  %s7 = ssub.s32 1, %s5
  %s8 = scalar_select 0, %s7, %s5
  $region1: #{tpu_custom_call.1} parent=0
    #allocation2 [shape = 'u8[32768]{0}', space=vmem, size = 0x8000, scoped, tag = 'input window, operand 0, single buffered']
    #allocation3 [shape = 's32[1]{0}', space=sflag, size = 0x4, scoped, tag = 'scoped memory for tpu_custom_call.1']
    #allocation4 [shape = 's32[1]{0}', space=sflag, size = 0x4, scoped, tag = 'scoped memory for tpu_custom_call.1']
    #allocation5 [shape = 's32[1]{0}', space=sflag, size = 0x4, scoped, tag = 'scoped memory for tpu_custom_call.1']
    #allocation6 [shape = 'u8[262144]{0}', space=vmem, size = 0x40000, scoped, tag = 'input window, operand 1, single buffered']
    #allocation7 [shape = 's32[1]{0}', space=sflag, size = 0x4, scoped, tag = 'scoped memory for tpu_custom_call.1']
    #allocation8 [shape = 'u8[512]{0}', space=smem, size = 0x200, scoped, tag = 'input window, operand 3, single buffered']
    #allocation9 [shape = 'u8[512]{0}', space=smem, size = 0x200, scoped, tag = 'output window, operand 0, single buffered']
    %9 = vsyncpa [#allocation3], 0
    %10 = vsyncpa [#allocation7], 0
    %11 = vsyncpa [#allocation5], 0
    %12 = vsyncpa [#allocation4], 0
    // Predicated region
    $region2: #{tpu_custom_call.1} parent=1 // pred_check
      _
    $region3: #{tpu_custom_call.1} parent=1 // pred_check_branch
      %14 = sbr.rel (0) target = $region5
    $region4: #{tpu_custom_call.1} parent=1 // pred_region
      %s16 = ssub.s32 1024, 1024
      %17 = vsyncadd [#allocation3], %s16
      %s18 = sshll.u32 [#allocation2], 4
      %s19 = int_to_ptr.vmem [resolvable:$true] %s18
      %24 = dma.hbm_to_vmem [thread:$0]  %s0, 1024, %s19, [#allocation3], 512, 512, 32
    $region5: #{tpu_custom_call.1} parent=1 // pred_fallthru
      _
    // Predicated region
    $region6: #{tpu_custom_call.1} parent=1 // pred_check
      _
    $region7: #{tpu_custom_call.1} parent=1 // pred_check_branch
      %26 = sbr.rel (0) target = $region9
    $region8: #{tpu_custom_call.1} parent=1 // pred_region
      %s28 = ssub.s32 8192, 8192
      %29 = vsyncadd [#allocation7], %s28
      %s30 = sshll.u32 [#allocation6], 4
      %s31 = int_to_ptr.vmem [resolvable:$true] %s30
      %36 = dma.hbm_to_vmem [thread:$0]  %s1, 8192, %s31, [#allocation7], 64, 64, 4
    $region9: #{tpu_custom_call.1} parent=1 // pred_fallthru
      _
    // Predicated region
    $region10: #{tpu_custom_call.1} parent=1 // pred_check
      _
    $region11: #{tpu_custom_call.1} parent=1 // pred_check_branch
      %38 = sbr.rel (0) target = $region13
    $region12: #{tpu_custom_call.1} parent=1 // pred_region
      _
    $region13: #{tpu_custom_call.1} parent=1 // pred_fallthru
      _
    // Predicated region
    $region14: #{tpu_custom_call.1} parent=1 // pred_check
      _
    $region15: #{tpu_custom_call.1} parent=1 // pred_check_branch
      %40 = sbr.rel (0) target = $region17
    $region16: #{tpu_custom_call.1} parent=1 // pred_region
      %s42 = ssub.s32 16, 16
      %43 = vsyncadd [#allocation5], %s42
      %s45 = sshll.u32 %s3, 4
      %s46 = int_to_ptr.vmem [resolvable:$true] %s45
      %48 = dma.vmem_to_smem %s46, 16, [#allocation8], [#allocation5]
    $region17: #{tpu_custom_call.1} parent=1 // pred_fallthru
      _
    // Predicated region
    $region18: #{tpu_custom_call.1} parent=1 // pred_check
      _
    $region19: #{tpu_custom_call.1} parent=1 // pred_check_branch
      %50 = sbr.rel (0) target = $region21
    $region20: #{tpu_custom_call.1} parent=1 // pred_region
      %51 = dma.done [#allocation3], 1024
    $region21: #{tpu_custom_call.1} parent=1 // pred_fallthru
      _
    // Predicated region
    $region22: #{tpu_custom_call.1} parent=1 // pred_check
      _
    $region23: #{tpu_custom_call.1} parent=1 // pred_check_branch
      %53 = sbr.rel (0) target = $region25
    $region24: #{tpu_custom_call.1} parent=1 // pred_region
      %54 = dma.done [#allocation7], 8192
    $region25: #{tpu_custom_call.1} parent=1 // pred_fallthru
      _
    // Predicated region
    $region26: #{tpu_custom_call.1} parent=1 // pred_check
      _
    $region27: #{tpu_custom_call.1} parent=1 // pred_check_branch
      %56 = sbr.rel (0) target = $region29
    $region28: #{tpu_custom_call.1} parent=1 // pred_region
      %57 = dma.done [#allocation5], 16
    $region29: #{tpu_custom_call.1} parent=1 // pred_fallthru
      _
    %58 = sfence
    %v60 = vld [vmem:[#allocation2] sm:$0xff]
    %v61 = vld [vmem:[#allocation2 + $0x8] sm:$0xff]
    %v62 = vld [vmem:[#allocation2 + $0x10] sm:$0xff]
    %v63 = vld [vmem:[#allocation2 + $0x18] sm:$0xff]
    %v64 = vld [vmem:[#allocation2 + $0x20] sm:$0xff]
    %v65 = vld [vmem:[#allocation2 + $0x28] sm:$0xff]
    %v66 = vld [vmem:[#allocation2 + $0x30] sm:$0xff]
    %v67 = vld [vmem:[#allocation2 + $0x38] sm:$0xff]
    %v68 = vld [vmem:[#allocation6] sm:$0xf]
    %v69 = vld [vmem:[#allocation6 + $0x4] sm:$0xf]
    %v70 = vld [vmem:[#allocation6 + $0x8] sm:$0xf]
    %v71 = vld [vmem:[#allocation6 + $0xc] sm:$0xf]
    %v72 = vld [vmem:[#allocation6 + $0x10] sm:$0xf]
    %v73 = vld [vmem:[#allocation6 + $0x14] sm:$0xf]
    %v74 = vld [vmem:[#allocation6 + $0x18] sm:$0xf]
    %v75 = vld [vmem:[#allocation6 + $0x1c] sm:$0xf]
    %v76 = vld [vmem:[#allocation6 + $0x20] sm:$0xf]
    %v77 = vld [vmem:[#allocation6 + $0x24] sm:$0xf]
    %v78 = vld [vmem:[#allocation6 + $0x28] sm:$0xf]
    %v79 = vld [vmem:[#allocation6 + $0x2c] sm:$0xf]
    %v80 = vld [vmem:[#allocation6 + $0x30] sm:$0xf]
    %v81 = vld [vmem:[#allocation6 + $0x34] sm:$0xf]
    %v82 = vld [vmem:[#allocation6 + $0x38] sm:$0xf]
    %v83 = vld [vmem:[#allocation6 + $0x3c] sm:$0xf]
    %v84 = vld [vmem:[#allocation6 + $0x40] sm:$0xf]
    %v85 = vld [vmem:[#allocation6 + $0x44] sm:$0xf]
    %v86 = vld [vmem:[#allocation6 + $0x48] sm:$0xf]
    %v87 = vld [vmem:[#allocation6 + $0x4c] sm:$0xf]
    %v88 = vld [vmem:[#allocation6 + $0x50] sm:$0xf]
    %v89 = vld [vmem:[#allocation6 + $0x54] sm:$0xf]
    %v90 = vld [vmem:[#allocation6 + $0x58] sm:$0xf]
    %v91 = vld [vmem:[#allocation6 + $0x5c] sm:$0xf]
    %v92 = vld [vmem:[#allocation6 + $0x60] sm:$0xf]
    %v93 = vld [vmem:[#allocation6 + $0x64] sm:$0xf]
    %v94 = vld [vmem:[#allocation6 + $0x68] sm:$0xf]
    %v95 = vld [vmem:[#allocation6 + $0x6c] sm:$0xf]
    %v96 = vld [vmem:[#allocation6 + $0x70] sm:$0xf]
    %v97 = vld [vmem:[#allocation6 + $0x74] sm:$0xf]
    %v98 = vld [vmem:[#allocation6 + $0x78] sm:$0xf]
    %v99 = vld [vmem:[#allocation6 + $0x7c] sm:$0xf]
    %v100 = vld [vmem:[#allocation6 + $0x80] sm:$0xf]
    %v101 = vld [vmem:[#allocation6 + $0x84] sm:$0xf]
    %v102 = vld [vmem:[#allocation6 + $0x88] sm:$0xf]
    %v103 = vld [vmem:[#allocation6 + $0x8c] sm:$0xf]
    %v104 = vld [vmem:[#allocation6 + $0x90] sm:$0xf]
    %v105 = vld [vmem:[#allocation6 + $0x94] sm:$0xf]
    %v106 = vld [vmem:[#allocation6 + $0x98] sm:$0xf]
    %v107 = vld [vmem:[#allocation6 + $0x9c] sm:$0xf]
    %v108 = vld [vmem:[#allocation6 + $0xa0] sm:$0xf]
    %v109 = vld [vmem:[#allocation6 + $0xa4] sm:$0xf]
    %v110 = vld [vmem:[#allocation6 + $0xa8] sm:$0xf]
    %v111 = vld [vmem:[#allocation6 + $0xac] sm:$0xf]
    %v112 = vld [vmem:[#allocation6 + $0xb0] sm:$0xf]
    %v113 = vld [vmem:[#allocation6 + $0xb4] sm:$0xf]
    %v114 = vld [vmem:[#allocation6 + $0xb8] sm:$0xf]
    %v115 = vld [vmem:[#allocation6 + $0xbc] sm:$0xf]
    %v116 = vld [vmem:[#allocation6 + $0xc0] sm:$0xf]
    %v117 = vld [vmem:[#allocation6 + $0xc4] sm:$0xf]
    %v118 = vld [vmem:[#allocation6 + $0xc8] sm:$0xf]
    %v119 = vld [vmem:[#allocation6 + $0xcc] sm:$0xf]
    %v120 = vld [vmem:[#allocation6 + $0xd0] sm:$0xf]
    %v121 = vld [vmem:[#allocation6 + $0xd4] sm:$0xf]
    %v122 = vld [vmem:[#allocation6 + $0xd8] sm:$0xf]
    %v123 = vld [vmem:[#allocation6 + $0xdc] sm:$0xf]
    %v124 = vld [vmem:[#allocation6 + $0xe0] sm:$0xf]
    %v125 = vld [vmem:[#allocation6 + $0xe4] sm:$0xf]
    %v126 = vld [vmem:[#allocation6 + $0xe8] sm:$0xf]
    %v127 = vld [vmem:[#allocation6 + $0xec] sm:$0xf]
    %v128 = vld [vmem:[#allocation6 + $0xf0] sm:$0xf]
    %v129 = vld [vmem:[#allocation6 + $0xf4] sm:$0xf]
    %v130 = vld [vmem:[#allocation6 + $0xf8] sm:$0xf]
    %v131 = vld [vmem:[#allocation6 + $0xfc] sm:$0xf]
    %v132 = vld [vmem:[#allocation6 + $0x100] sm:$0xf]
    %v133 = vld [vmem:[#allocation6 + $0x104] sm:$0xf]
    %v134 = vld [vmem:[#allocation6 + $0x108] sm:$0xf]
    %v135 = vld [vmem:[#allocation6 + $0x10c] sm:$0xf]
    %v136 = vld [vmem:[#allocation6 + $0x110] sm:$0xf]
    %v137 = vld [vmem:[#allocation6 + $0x114] sm:$0xf]
    %v138 = vld [vmem:[#allocation6 + $0x118] sm:$0xf]
    %v139 = vld [vmem:[#allocation6 + $0x11c] sm:$0xf]
    %v140 = vld [vmem:[#allocation6 + $0x120] sm:$0xf]
    %v141 = vld [vmem:[#allocation6 + $0x124] sm:$0xf]
    %v142 = vld [vmem:[#allocation6 + $0x128] sm:$0xf]
    %v143 = vld [vmem:[#allocation6 + $0x12c] sm:$0xf]
    %v144 = vld [vmem:[#allocation6 + $0x130] sm:$0xf]
    %v145 = vld [vmem:[#allocation6 + $0x134] sm:$0xf]
    %v146 = vld [vmem:[#allocation6 + $0x138] sm:$0xf]
    %v147 = vld [vmem:[#allocation6 + $0x13c] sm:$0xf]
    %v148 = vld [vmem:[#allocation6 + $0x140] sm:$0xf]
    %v149 = vld [vmem:[#allocation6 + $0x144] sm:$0xf]
    %v150 = vld [vmem:[#allocation6 + $0x148] sm:$0xf]
    %v151 = vld [vmem:[#allocation6 + $0x14c] sm:$0xf]
    %v152 = vld [vmem:[#allocation6 + $0x150] sm:$0xf]
    %v153 = vld [vmem:[#allocation6 + $0x154] sm:$0xf]
    %v154 = vld [vmem:[#allocation6 + $0x158] sm:$0xf]
    %v155 = vld [vmem:[#allocation6 + $0x15c] sm:$0xf]
    %v156 = vld [vmem:[#allocation6 + $0x160] sm:$0xf]
    %v157 = vld [vmem:[#allocation6 + $0x164] sm:$0xf]
    %v158 = vld [vmem:[#allocation6 + $0x168] sm:$0xf]
    %v159 = vld [vmem:[#allocation6 + $0x16c] sm:$0xf]
    %v160 = vld [vmem:[#allocation6 + $0x170] sm:$0xf]
    %v161 = vld [vmem:[#allocation6 + $0x174] sm:$0xf]
    %v162 = vld [vmem:[#allocation6 + $0x178] sm:$0xf]
    %v163 = vld [vmem:[#allocation6 + $0x17c] sm:$0xf]
    %v164 = vld [vmem:[#allocation6 + $0x180] sm:$0xf]
    %v165 = vld [vmem:[#allocation6 + $0x184] sm:$0xf]
    %v166 = vld [vmem:[#allocation6 + $0x188] sm:$0xf]
    %v167 = vld [vmem:[#allocation6 + $0x18c] sm:$0xf]
    %v168 = vld [vmem:[#allocation6 + $0x190] sm:$0xf]
    %v169 = vld [vmem:[#allocation6 + $0x194] sm:$0xf]
    %v170 = vld [vmem:[#allocation6 + $0x198] sm:$0xf]
    %v171 = vld [vmem:[#allocation6 + $0x19c] sm:$0xf]
    %v172 = vld [vmem:[#allocation6 + $0x1a0] sm:$0xf]
    %v173 = vld [vmem:[#allocation6 + $0x1a4] sm:$0xf]
    %v174 = vld [vmem:[#allocation6 + $0x1a8] sm:$0xf]
    %v175 = vld [vmem:[#allocation6 + $0x1ac] sm:$0xf]
    %v176 = vld [vmem:[#allocation6 + $0x1b0] sm:$0xf]
    %v177 = vld [vmem:[#allocation6 + $0x1b4] sm:$0xf]
    %v178 = vld [vmem:[#allocation6 + $0x1b8] sm:$0xf]
    %v179 = vld [vmem:[#allocation6 + $0x1bc] sm:$0xf]
    %v180 = vld [vmem:[#allocation6 + $0x1c0] sm:$0xf]
    %v181 = vld [vmem:[#allocation6 + $0x1c4] sm:$0xf]
    %v182 = vld [vmem:[#allocation6 + $0x1c8] sm:$0xf]
    %v183 = vld [vmem:[#allocation6 + $0x1cc] sm:$0xf]
    %v184 = vld [vmem:[#allocation6 + $0x1d0] sm:$0xf]
    %v185 = vld [vmem:[#allocation6 + $0x1d4] sm:$0xf]
    %v186 = vld [vmem:[#allocation6 + $0x1d8] sm:$0xf]
    %v187 = vld [vmem:[#allocation6 + $0x1dc] sm:$0xf]
    %v188 = vld [vmem:[#allocation6 + $0x1e0] sm:$0xf]
    %v189 = vld [vmem:[#allocation6 + $0x1e4] sm:$0xf]
    %v190 = vld [vmem:[#allocation6 + $0x1e8] sm:$0xf]
    %v191 = vld [vmem:[#allocation6 + $0x1ec] sm:$0xf]
    %v192 = vld [vmem:[#allocation6 + $0x1f0] sm:$0xf]
    %v193 = vld [vmem:[#allocation6 + $0x1f4] sm:$0xf]
    %v194 = vld [vmem:[#allocation6 + $0x1f8] sm:$0xf]
    %v195 = vld [vmem:[#allocation6 + $0x1fc] sm:$0xf]
    %v196 = vld [vmem:[%s2] sm:$0x1]
    %v198 = vlaneseq
    %v199 = vshrl.u32 %v198, 7
    %v200 = vsub.s32 0, %v199
    %v201 = vrot.slane %v196, %v200
    %v211 = vunpack.c.l.b16 %v60
    %v212 = vunpack.c.h.b16 %v60
    %v213 = vunpack.c.l.b16 %v61
    %v214 = vunpack.c.h.b16 %v61
    %v215 = vunpack.c.l.b16 %v62
    %v216 = vunpack.c.h.b16 %v62
    %v217 = vunpack.c.l.b16 %v63
    %v218 = vunpack.c.h.b16 %v63
    %v219 = vunpack.c.l.b16 %v64
    %v220 = vunpack.c.h.b16 %v64
    %v221 = vunpack.c.l.b16 %v65
    %v222 = vunpack.c.h.b16 %v65
    %v223 = vunpack.c.l.b16 %v66
    %v224 = vunpack.c.h.b16 %v66
    %v225 = vunpack.c.l.b16 %v67
    %v226 = vunpack.c.h.b16 %v67
    %v227 = vpack.c.b16 %v219, %v211
    %v228 = vpack.c.b16 %v220, %v212
    %v229 = vpack.c.b16 %v221, %v213
    %v230 = vpack.c.b16 %v222, %v214
    %v231 = vpack.c.b16 %v223, %v215
    %v232 = vpack.c.b16 %v224, %v216
    %v233 = vpack.c.b16 %v225, %v217
    %v234 = vpack.c.b16 %v226, %v218
    %v371 = vunpack.c.l.b16 %v68
    %v372 = vunpack.c.l.b16 %v69
    %v373 = vunpack.c.l.b16 %v70
    %v374 = vunpack.c.l.b16 %v71
    %v375 = vunpack.c.l.b16 %v72
    %v376 = vunpack.c.l.b16 %v73
    %v377 = vunpack.c.l.b16 %v74
    %v378 = vunpack.c.l.b16 %v75
    %v379 = vunpack.c.l.b16 %v76
    %v380 = vunpack.c.l.b16 %v77
    %v381 = vunpack.c.l.b16 %v78
    %v382 = vunpack.c.l.b16 %v79
    %v383 = vunpack.c.l.b16 %v80
    %v384 = vunpack.c.l.b16 %v81
    %v385 = vunpack.c.l.b16 %v82
    %v386 = vunpack.c.l.b16 %v83
    %v387 = vunpack.c.l.b16 %v84
    %v388 = vunpack.c.l.b16 %v85
    %v389 = vunpack.c.l.b16 %v86
    %v390 = vunpack.c.l.b16 %v87
    %v391 = vunpack.c.l.b16 %v88
    %v392 = vunpack.c.l.b16 %v89
    %v393 = vunpack.c.l.b16 %v90
    %v394 = vunpack.c.l.b16 %v91
    %v395 = vunpack.c.l.b16 %v92
    %v396 = vunpack.c.l.b16 %v93
    %v397 = vunpack.c.l.b16 %v94
    %v398 = vunpack.c.l.b16 %v95
    %v399 = vunpack.c.l.b16 %v96
    %v400 = vunpack.c.l.b16 %v97
    %v401 = vunpack.c.l.b16 %v98
    %v402 = vunpack.c.l.b16 %v99
    %v403 = vunpack.c.l.b16 %v100
    %v404 = vunpack.c.l.b16 %v101
    %v405 = vunpack.c.l.b16 %v102
    %v406 = vunpack.c.l.b16 %v103
    %v407 = vunpack.c.l.b16 %v104
    %v408 = vunpack.c.l.b16 %v105
    %v409 = vunpack.c.l.b16 %v106
    %v410 = vunpack.c.l.b16 %v107
    %v411 = vunpack.c.l.b16 %v108
    %v412 = vunpack.c.l.b16 %v109
    %v413 = vunpack.c.l.b16 %v110
    %v414 = vunpack.c.l.b16 %v111
    %v415 = vunpack.c.l.b16 %v112
    %v416 = vunpack.c.l.b16 %v113
    %v417 = vunpack.c.l.b16 %v114
    %v418 = vunpack.c.l.b16 %v115
    %v419 = vunpack.c.l.b16 %v116
    %v420 = vunpack.c.l.b16 %v117
    %v421 = vunpack.c.l.b16 %v118
    %v422 = vunpack.c.l.b16 %v119
    %v423 = vunpack.c.l.b16 %v120
    %v424 = vunpack.c.l.b16 %v121
    %v425 = vunpack.c.l.b16 %v122
    %v426 = vunpack.c.l.b16 %v123
    %v427 = vunpack.c.l.b16 %v124
    %v428 = vunpack.c.l.b16 %v125
    %v429 = vunpack.c.l.b16 %v126
    %v430 = vunpack.c.l.b16 %v127
    %v431 = vunpack.c.l.b16 %v128
    %v432 = vunpack.c.l.b16 %v129
    %v433 = vunpack.c.l.b16 %v130
    %v434 = vunpack.c.l.b16 %v131
    %v435 = vunpack.c.l.b16 %v132
    %v436 = vunpack.c.l.b16 %v133
    %v437 = vunpack.c.l.b16 %v134
    %v438 = vunpack.c.l.b16 %v135
    %v439 = vunpack.c.l.b16 %v136
    %v440 = vunpack.c.l.b16 %v137
    %v441 = vunpack.c.l.b16 %v138
    %v442 = vunpack.c.l.b16 %v139
    %v443 = vunpack.c.l.b16 %v140
    %v444 = vunpack.c.l.b16 %v141
    %v445 = vunpack.c.l.b16 %v142
    %v446 = vunpack.c.l.b16 %v143
    %v447 = vunpack.c.l.b16 %v144
    %v448 = vunpack.c.l.b16 %v145
    %v449 = vunpack.c.l.b16 %v146
    %v450 = vunpack.c.l.b16 %v147
    %v451 = vunpack.c.l.b16 %v148
    %v452 = vunpack.c.l.b16 %v149
    %v453 = vunpack.c.l.b16 %v150
    %v454 = vunpack.c.l.b16 %v151
    %v455 = vunpack.c.l.b16 %v152
    %v456 = vunpack.c.l.b16 %v153
    %v457 = vunpack.c.l.b16 %v154
    %v458 = vunpack.c.l.b16 %v155
    %v459 = vunpack.c.l.b16 %v156
    %v460 = vunpack.c.l.b16 %v157
    %v461 = vunpack.c.l.b16 %v158
    %v462 = vunpack.c.l.b16 %v159
    %v463 = vunpack.c.l.b16 %v160
    %v464 = vunpack.c.l.b16 %v161
    %v465 = vunpack.c.l.b16 %v162
    %v466 = vunpack.c.l.b16 %v163
    %v467 = vunpack.c.l.b16 %v164
    %v468 = vunpack.c.l.b16 %v165
    %v469 = vunpack.c.l.b16 %v166
    %v470 = vunpack.c.l.b16 %v167
    %v471 = vunpack.c.l.b16 %v168
    %v472 = vunpack.c.l.b16 %v169
    %v473 = vunpack.c.l.b16 %v170
    %v474 = vunpack.c.l.b16 %v171
    %v475 = vunpack.c.l.b16 %v172
    %v476 = vunpack.c.l.b16 %v173
    %v477 = vunpack.c.l.b16 %v174
    %v478 = vunpack.c.l.b16 %v175
    %v479 = vunpack.c.l.b16 %v176
    %v480 = vunpack.c.l.b16 %v177
    %v481 = vunpack.c.l.b16 %v178
    %v482 = vunpack.c.l.b16 %v179
    %v483 = vunpack.c.l.b16 %v180
    %v484 = vunpack.c.l.b16 %v181
    %v485 = vunpack.c.l.b16 %v182
    %v486 = vunpack.c.l.b16 %v183
    %v487 = vunpack.c.l.b16 %v184
    %v488 = vunpack.c.l.b16 %v185
    %v489 = vunpack.c.l.b16 %v186
    %v490 = vunpack.c.l.b16 %v187
    %v491 = vunpack.c.l.b16 %v188
    %v492 = vunpack.c.l.b16 %v189
    %v493 = vunpack.c.l.b16 %v190
    %v494 = vunpack.c.l.b16 %v191
    %v495 = vunpack.c.l.b16 %v192
    %v496 = vunpack.c.l.b16 %v193
    %v497 = vunpack.c.l.b16 %v194
    %v498 = vunpack.c.l.b16 %v195
    %v499 = vpack.c.b16 %v372, %v371
    %v500 = vpack.c.b16 %v374, %v373
    %v501 = vpack.c.b16 %v376, %v375
    %v502 = vpack.c.b16 %v378, %v377
    %v503 = vpack.c.b16 %v380, %v379
    %v504 = vpack.c.b16 %v382, %v381
    %v505 = vpack.c.b16 %v384, %v383
    %v506 = vpack.c.b16 %v386, %v385
    %v507 = vpack.c.b16 %v388, %v387
    %v508 = vpack.c.b16 %v390, %v389
    %v509 = vpack.c.b16 %v392, %v391
    %v510 = vpack.c.b16 %v394, %v393
    %v511 = vpack.c.b16 %v396, %v395
    %v512 = vpack.c.b16 %v398, %v397
    %v513 = vpack.c.b16 %v400, %v399
    %v514 = vpack.c.b16 %v402, %v401
    %v515 = vpack.c.b16 %v404, %v403
    %v516 = vpack.c.b16 %v406, %v405
    %v517 = vpack.c.b16 %v408, %v407
    %v518 = vpack.c.b16 %v410, %v409
    %v519 = vpack.c.b16 %v412, %v411
    %v520 = vpack.c.b16 %v414, %v413
    %v521 = vpack.c.b16 %v416, %v415
    %v522 = vpack.c.b16 %v418, %v417
    %v523 = vpack.c.b16 %v420, %v419
    %v524 = vpack.c.b16 %v422, %v421
    %v525 = vpack.c.b16 %v424, %v423
    %v526 = vpack.c.b16 %v426, %v425
    %v527 = vpack.c.b16 %v428, %v427
    %v528 = vpack.c.b16 %v430, %v429
    %v529 = vpack.c.b16 %v432, %v431
    %v530 = vpack.c.b16 %v434, %v433
    %v531 = vpack.c.b16 %v436, %v435
    %v532 = vpack.c.b16 %v438, %v437
    %v533 = vpack.c.b16 %v440, %v439
    %v534 = vpack.c.b16 %v442, %v441
    %v535 = vpack.c.b16 %v444, %v443
    %v536 = vpack.c.b16 %v446, %v445
    %v537 = vpack.c.b16 %v448, %v447
    %v538 = vpack.c.b16 %v450, %v449
    %v539 = vpack.c.b16 %v452, %v451
    %v540 = vpack.c.b16 %v454, %v453
    %v541 = vpack.c.b16 %v456, %v455
    %v542 = vpack.c.b16 %v458, %v457
    %v543 = vpack.c.b16 %v460, %v459
    %v544 = vpack.c.b16 %v462, %v461
    %v545 = vpack.c.b16 %v464, %v463
    %v546 = vpack.c.b16 %v466, %v465
    %v547 = vpack.c.b16 %v468, %v467
    %v548 = vpack.c.b16 %v470, %v469
    %v549 = vpack.c.b16 %v472, %v471
    %v550 = vpack.c.b16 %v474, %v473
    %v551 = vpack.c.b16 %v476, %v475
    %v552 = vpack.c.b16 %v478, %v477
    %v553 = vpack.c.b16 %v480, %v479
    %v554 = vpack.c.b16 %v482, %v481
    %v555 = vpack.c.b16 %v484, %v483
    %v556 = vpack.c.b16 %v486, %v485
    %v557 = vpack.c.b16 %v488, %v487
    %v558 = vpack.c.b16 %v490, %v489
    %v559 = vpack.c.b16 %v492, %v491
    %v560 = vpack.c.b16 %v494, %v493
    %v561 = vpack.c.b16 %v496, %v495
    %v562 = vpack.c.b16 %v498, %v497
    %627 = vmatprep.subr.bf16.mxu0 0
    %628 = vmatpush1.bf16.msra.mxu0 %v506
    %629 = vmatprep.subr.bf16.mxu0 0
    %630 = vmatpush1.bf16.msra.mxu0 %v505
    %631 = vmatprep.subr.bf16.mxu0 0
    %632 = vmatpush1.bf16.msra.mxu0 %v504
    %633 = vmatprep.subr.bf16.mxu0 0
    %634 = vmatpush1.bf16.msra.mxu0 %v503
    %635 = vmatprep.subr.bf16.mxu0 0
    %636 = vmatpush1.bf16.msra.mxu0 %v502
    %637 = vmatprep.subr.bf16.mxu0 0
    %638 = vmatpush1.bf16.msra.mxu0 %v501
    %639 = vmatprep.subr.bf16.mxu0 0
    %640 = vmatpush1.bf16.msra.mxu0 %v500
    %641 = vmatprep.subr.bf16.mxu0 0
    %642 = vmatpush1.bf16.msra.mxu0 %v499
    %643 = vmatprep.subr.bf16.mxu0 0
    %644 = vmatpush2.bf16.msra.mxu0 %v514
    %645 = vmatprep.subr.bf16.mxu0 0
    %646 = vmatpush2.bf16.msra.mxu0 %v513
    %647 = vmatprep.subr.bf16.mxu0 0
    %648 = vmatpush2.bf16.msra.mxu0 %v512
    %649 = vmatprep.subr.bf16.mxu0 0
    %650 = vmatpush2.bf16.msra.mxu0 %v511
    %651 = vmatprep.subr.bf16.mxu0 0
    %652 = vmatpush2.bf16.msra.mxu0 %v510
    %653 = vmatprep.subr.bf16.mxu0 0
    %654 = vmatpush2.bf16.msra.mxu0 %v509
    %655 = vmatprep.subr.bf16.mxu0 0
    %656 = vmatpush2.bf16.msra.mxu0 %v508
    %657 = vmatprep.subr.bf16.mxu0 0
    %658 = vmatpush2.bf16.msra.mxu0 %v507
    %659 = vmatprep.mubr.bf16.mxu0 %v228
    %660 = vmatmul.mubr.bf16.gmra.mxu0 %v227
    %v661 = vpop.f32.mrf.mxu0
    %v662 = vadd.f32 %v201, %v661
    %v663 = vpop.f32.mrf.mxu0
    %v664 = vpop.f32.mrf.mxu0
    %v665 = vadd.f32 %v201, %v664
    %v666 = vpop.f32.mrf.mxu0
    %667 = vdwg.mxu0
    %668 = vmatprep.subr.bf16.mxu0 0
    %669 = vmatpush1.bf16.msra.mxu0 %v522
    %670 = vmatprep.subr.bf16.mxu0 0
    %671 = vmatpush1.bf16.msra.mxu0 %v521
    %672 = vmatprep.subr.bf16.mxu0 0
    %673 = vmatpush1.bf16.msra.mxu0 %v520
    %674 = vmatprep.subr.bf16.mxu0 0
    %675 = vmatpush1.bf16.msra.mxu0 %v519
    %676 = vmatprep.subr.bf16.mxu0 0
    %677 = vmatpush1.bf16.msra.mxu0 %v518
    %678 = vmatprep.subr.bf16.mxu0 0
    %679 = vmatpush1.bf16.msra.mxu0 %v517
    %680 = vmatprep.subr.bf16.mxu0 0
    %681 = vmatpush1.bf16.msra.mxu0 %v516
    %682 = vmatprep.subr.bf16.mxu0 0
    %683 = vmatpush1.bf16.msra.mxu0 %v515
    %684 = vmatprep.subr.bf16.mxu0 0
    %685 = vmatpush2.bf16.msra.mxu0 %v530
    %686 = vmatprep.subr.bf16.mxu0 0
    %687 = vmatpush2.bf16.msra.mxu0 %v529
    %688 = vmatprep.subr.bf16.mxu0 0
    %689 = vmatpush2.bf16.msra.mxu0 %v528
    %690 = vmatprep.subr.bf16.mxu0 0
    %691 = vmatpush2.bf16.msra.mxu0 %v527
    %692 = vmatprep.subr.bf16.mxu0 0
    %693 = vmatpush2.bf16.msra.mxu0 %v526
    %694 = vmatprep.subr.bf16.mxu0 0
    %695 = vmatpush2.bf16.msra.mxu0 %v525
    %696 = vmatprep.subr.bf16.mxu0 0
    %697 = vmatpush2.bf16.msra.mxu0 %v524
    %698 = vmatprep.subr.bf16.mxu0 0
    %699 = vmatpush2.bf16.msra.mxu0 %v523
    %700 = vmatprep.mubr.bf16.mxu0 %v230
    %701 = vmatmul.mubr.bf16.gmra.mxu0 %v229
    %v702 = vpop.f32.mrf.mxu0
    %v703 = vadd.f32 %v662, %v702
    %v704 = vpop.f32.mrf.mxu0
    %v705 = vpop.f32.mrf.mxu0
    %v706 = vadd.f32 %v665, %v705
    %v707 = vpop.f32.mrf.mxu0
    %708 = vdwg.mxu0
    %709 = vmatprep.subr.bf16.mxu0 0
    %710 = vmatpush1.bf16.msra.mxu0 %v538
    %711 = vmatprep.subr.bf16.mxu0 0
    %712 = vmatpush1.bf16.msra.mxu0 %v537
    %713 = vmatprep.subr.bf16.mxu0 0
    %714 = vmatpush1.bf16.msra.mxu0 %v536
    %715 = vmatprep.subr.bf16.mxu0 0
    %716 = vmatpush1.bf16.msra.mxu0 %v535
    %717 = vmatprep.subr.bf16.mxu0 0
    %718 = vmatpush1.bf16.msra.mxu0 %v534
    %719 = vmatprep.subr.bf16.mxu0 0
    %720 = vmatpush1.bf16.msra.mxu0 %v533
    %721 = vmatprep.subr.bf16.mxu0 0
    %722 = vmatpush1.bf16.msra.mxu0 %v532
    %723 = vmatprep.subr.bf16.mxu0 0
    %724 = vmatpush1.bf16.msra.mxu0 %v531
    %725 = vmatprep.subr.bf16.mxu0 0
    %726 = vmatpush2.bf16.msra.mxu0 %v546
    %727 = vmatprep.subr.bf16.mxu0 0
    %728 = vmatpush2.bf16.msra.mxu0 %v545
    %729 = vmatprep.subr.bf16.mxu0 0
    %730 = vmatpush2.bf16.msra.mxu0 %v544
    %731 = vmatprep.subr.bf16.mxu0 0
    %732 = vmatpush2.bf16.msra.mxu0 %v543
    %733 = vmatprep.subr.bf16.mxu0 0
    %734 = vmatpush2.bf16.msra.mxu0 %v542
    %735 = vmatprep.subr.bf16.mxu0 0
    %736 = vmatpush2.bf16.msra.mxu0 %v541
    %737 = vmatprep.subr.bf16.mxu0 0
    %738 = vmatpush2.bf16.msra.mxu0 %v540
    %739 = vmatprep.subr.bf16.mxu0 0
    %740 = vmatpush2.bf16.msra.mxu0 %v539
    %741 = vmatprep.mubr.bf16.mxu0 %v232
    %742 = vmatmul.mubr.bf16.gmra.mxu0 %v231
    %v743 = vpop.f32.mrf.mxu0
    %v744 = vadd.f32 %v703, %v743
    %v745 = vpop.f32.mrf.mxu0
    %v746 = vpop.f32.mrf.mxu0
    %v747 = vadd.f32 %v706, %v746
    %v748 = vpop.f32.mrf.mxu0
    %749 = vdwg.mxu0
    %750 = vmatprep.subr.bf16.mxu0 0
    %751 = vmatpush1.bf16.msra.mxu0 %v554
    %752 = vmatprep.subr.bf16.mxu0 0
    %753 = vmatpush1.bf16.msra.mxu0 %v553
    %754 = vmatprep.subr.bf16.mxu0 0
    %755 = vmatpush1.bf16.msra.mxu0 %v552
    %756 = vmatprep.subr.bf16.mxu0 0
    %757 = vmatpush1.bf16.msra.mxu0 %v551
    %758 = vmatprep.subr.bf16.mxu0 0
    %759 = vmatpush1.bf16.msra.mxu0 %v550
    %760 = vmatprep.subr.bf16.mxu0 0
    %761 = vmatpush1.bf16.msra.mxu0 %v549
    %762 = vmatprep.subr.bf16.mxu0 0
    %763 = vmatpush1.bf16.msra.mxu0 %v548
    %764 = vmatprep.subr.bf16.mxu0 0
    %765 = vmatpush1.bf16.msra.mxu0 %v547
    %766 = vmatprep.subr.bf16.mxu0 0
    %767 = vmatpush2.bf16.msra.mxu0 %v562
    %768 = vmatprep.subr.bf16.mxu0 0
    %769 = vmatpush2.bf16.msra.mxu0 %v561
    %770 = vmatprep.subr.bf16.mxu0 0
    %771 = vmatpush2.bf16.msra.mxu0 %v560
    %772 = vmatprep.subr.bf16.mxu0 0
    %773 = vmatpush2.bf16.msra.mxu0 %v559
    %774 = vmatprep.subr.bf16.mxu0 0
    %775 = vmatpush2.bf16.msra.mxu0 %v558
    %776 = vmatprep.subr.bf16.mxu0 0
    %777 = vmatpush2.bf16.msra.mxu0 %v557
    %778 = vmatprep.subr.bf16.mxu0 0
    %779 = vmatpush2.bf16.msra.mxu0 %v556
    %780 = vmatprep.subr.bf16.mxu0 0
    %781 = vmatpush2.bf16.msra.mxu0 %v555
    %782 = vmatprep.mubr.bf16.mxu0 %v234
    %783 = vmatmul.mubr.bf16.gmra.mxu0 %v233
    %v784 = vpop.f32.mrf.mxu0
    %v785 = vadd.f32 %v744, %v784
    %v786 = vpop.f32.mrf.mxu0
    %v787 = vpop.f32.mrf.mxu0
    %v788 = vadd.f32 %v747, %v787
    %v789 = vpop.f32.mrf.mxu0
    %790 = vdwg.mxu0
    %791 = vmax.xlane.f32.xlu0 %v785
    %v792 = vpop.xlane.xlu0 %791
    %793 = vmax.xlane.f32.xlu0 %v788
    %v794 = vpop.xlane.xlu0 %793
    %v795 = vsub.f32 %v785, %v792
    %v796 = vsub.f32 %v788, %v794
    %v797 = vmul.f32 %v795, 1.442695
    %v798 = vpow.pop %v797
    %v799 = vmul.f32 %v796, 1.442695
    %v800 = vpow.pop %v799
    %801 = vadd.xlane.f32.xlu0 %v798
    %v802 = vpop.xlane.xlu0 %801
    %803 = vadd.xlane.f32.xlu0 %v800
    %v804 = vpop.xlane.xlu0 %803
    %v805 = vlog2.pop %v802
    %v806 = vmul.f32 %v805, 0.6931472
    %v807 = vlog2.pop %v804
    %v808 = vmul.f32 %v807, 0.6931472
    %v809 = vadd.f32 %v792, %v806
    %v810 = vadd.f32 %v794, %v808
    %v811 = vlaneseq
    %v812 = vshrl.u32 %v811, 7
    %v813 = vadd.s32 %v812, 8
    %v814 = vlaneseq
    %v815 = vand.u32 %v814, 127
    %vm816 = vcmp.eq.s32.totalorder %v812, 0
    %vm817 = vcmp.eq.s32.totalorder %v813, 0
    %s818 = sld [smem:[#allocation8]]
    %v819 = vstv %s818
    %v820 = vsel %vm816, %v819, 4294967295
    %v821 = vsel %vm817, %v819, 4294967295
    %vm822 = vcmp.eq.s32.totalorder %v812, 1
    %vm823 = vcmp.eq.s32.totalorder %v813, 1
    %s824 = sld [smem:[#allocation8 + $0x1]]
    %v825 = vstv %s824
    %v826 = vsel %vm822, %v825, %v820
    %v827 = vsel %vm823, %v825, %v821
    %vm828 = vcmp.eq.s32.totalorder %v815, %v826
    %vm829 = vcmp.eq.s32.totalorder %v815, %v827
    %v830 = vsel %vm828, 1, 0
    %v831 = vsel %vm829, 1, 0
    %v832 = vcvt.s32.f32 %v830
    %v833 = vcvt.s32.f32 %v831
    %v834 = vmul.f32 %v832, %v785
    %v835 = vmul.f32 %v833, %v788
    %836 = vadd.xlane.f32.xlu0 %v834
    %v837 = vpop.xlane.xlu0 %836
    %838 = vadd.xlane.f32.xlu0 %v835
    %v839 = vpop.xlane.xlu0 %838
    %v840 = vsub.f32 %v809, %v837
    %v841 = vsub.f32 %v810, %v839
    %vm842 = vcmp.lt.s32.totalorder %v812, 2
    %vm843 = vcmp.lt.s32.totalorder %v813, 2
    %v844 = vsel %vm842, 1, 0
    %v845 = vsel %vm843, 1, 0
    %v846 = vcvt.s32.f32 %v844
    %v847 = vcvt.s32.f32 %v845
    %v848 = vmul.f32 %v840, %v846
    %v849 = vmul.f32 %v841, %v847
    %vm850 = vcmask 7168
    %v851 = vsel %vm850, %v848, 0.0
    %v852 = vsel %vm850, %v849, 0.0
    %v853 = vadd.f32 %v851, %v852
    %854 = vadd.xlane.f32.xlu0 %v853
    %v855 = vpop.xlane.xlu0 %854
    %v856 = vrot.slane %v855, 4
    %v857 = vadd.f32 %v855, %v856
    %v858 = vrot.slane %v857, 2
    %v859 = vadd.f32 %v857, %v858
    %v860 = vrot.slane %v859, 1
    %v861 = vadd.f32 %v859, %v860
    %s862 = vtos %v861
    %s863 = smul.f32 %s862, 0.5
    %s864 = scalar_lea.smem [#allocation9], 0
    %865 = sst [smem:[%s864]] %s863
    // Predicated region
    $region30: #{tpu_custom_call.1} parent=1 // pred_check
      _
    $region31: #{tpu_custom_call.1} parent=1 // pred_check_branch
      %867 = sbr.rel (0) target = $region33
    $region32: #{tpu_custom_call.1} parent=1 // pred_region
      %s869 = ssub.s32 16, 16
      %870 = vsyncadd [#allocation4], %s869
      %873 = dma.smem_to_hbm [#allocation9], 16, %s4, [#allocation4]
    $region33: #{tpu_custom_call.1} parent=1 // pred_fallthru
      _
    // Predicated region
    $region34: #{tpu_custom_call.1} parent=1 // pred_check
      _
    $region35: #{tpu_custom_call.1} parent=1 // pred_check_branch
      %875 = sbr.rel (0) target = $region37
    $region36: #{tpu_custom_call.1} parent=1 // pred_region
      %876 = dma.done [#allocation4], 16
    $region37: #{tpu_custom_call.1} parent=1 // pred_fallthru
      _
    %877 = sfence
    %878 = vsyncpa [#allocation3], 1
    %879 = vsyncpa [#allocation7], 1
    %880 = vsyncpa [#allocation4], 1
    %881 = vsyncpa [#allocation5], 1

</llo_original>
